<compile_context>
chip_gen: v6e
topology: v6e:2x2x1
jax: 0.10.0
libtpu: 0.0.40
codegen_flags: <defaults>
</compile_context>

<pallas_src>
import jax
import jax.numpy as jnp
from jax.experimental import pallas as pl
from jax.experimental.pallas import tpu as pltpu

NEG_SLOPE = 0.01  # F.leaky_relu default
LANE = 128
SUBLANE = 8


def _round_up(n, m):
    return ((n + m - 1) // m) * m


def _leaky_relu(x):
    return jnp.where(x > 0, x, NEG_SLOPE * x)


def qnet_kernel(x_ref, w1_ref, b1_ref, w2_ref, b2_ref, w3_ref, b3_ref, o_ref):
    """One batch tile: three MXU matmuls + f32 bias/leaky_relu epilogue.

    Weights are consumed in their stored dtype (f32 or bf16) -- no full-matrix VPU
    casts inside the grid loop. Accumulation is f32 via preferred_element_type;
    biases are f32 and the activation epilogue is f32.
    """
    cdt = w1_ref.dtype
    x = x_ref[...].astype(cdt)                               # (bb, in_size), K stays logical
    h = jnp.dot(x, w1_ref[...], preferred_element_type=jnp.float32)
    h = _leaky_relu(h + b1_ref[...])
    h = jnp.dot(h.astype(cdt), w2_ref[...], preferred_element_type=jnp.float32)
    h = _leaky_relu(h + b2_ref[...])
    y = jnp.dot(h.astype(cdt), w3_ref[...], preferred_element_type=jnp.float32)
    o_ref[...] = (y + b3_ref[...]).astype(o_ref.dtype)       # lane-dense unmasked store


def _choose_batch_tiling(batch, block_b):
    """Pick (bb, nb): batch-tile rows and grid length.

    * bb is a sublane multiple (or the whole batch when batch <= 8).
    * nb >= 2 whenever batch > 8 so both v7x TensorCores get work.
    * bb ~= ceil(batch / nb) (capped by block_b) to minimize padded rows.
    """
    if batch <= SUBLANE:
        return batch, 1                                # single full-dim block
    nb = max(2, pl.cdiv(batch, block_b))
    bb = _round_up(pl.cdiv(batch, nb), SUBLANE)
    nb = pl.cdiv(batch, bb)
    return bb, nb


def linear_qnet_forward(x, padded_params, *, logical_out_size,
                        out_dtype=jnp.float32, block_b=512):
    """x: [B, input_size] float32 (unpadded -- fed straight to the kernel).

    padded_params: dict from pad_params(). wN are [in, out] (transposed vs. torch's
    [out, in]); hidden/output dims are zero-padded to multiples of 128; w1's input
    dim is kept logical. Returns [B, logical_out_size] in out_dtype.
    """
    w1, b1, w2, b2, w3, b3 = (padded_params[k]
                              for k in ("w1", "b1", "w2", "b2", "w3", "b3"))
    B, in_size = x.shape
    assert w1.shape[0] == in_size, "w1 input dim must match x features"
    H = w1.shape[1]
    OUT = w3.shape[1]

    bb, nb = _choose_batch_tiling(B, block_b)
    B_pad = bb * nb
    # Only batch rows are padded (<= 7 typical); feature dims are never padded in HBM.
    x_in = x if B_pad == B else jnp.pad(x, ((0, B_pad - B), (0, 0)))

    # Explicit VMEM plan (worst case: double-buffered weights) -> vmem_limit_bytes.
    out_itemsize = jnp.dtype(out_dtype).itemsize
    weight_bytes = sum(int(a.nbytes) for a in (w1, b1, w2, b2, w3, b3))
    tile_bytes = 2 * (bb * in_size * x.dtype.itemsize + bb * OUT * out_itemsize)
    inter_bytes = bb * (2 * H + OUT) * 4
    vmem_limit = int(min(96 << 20,
                         max(32 << 20, 2 * (2 * weight_bytes + tile_bytes + inter_bytes))))

    flops = 2 * B_pad * (in_size * H + H * H + H * OUT)
    bytes_accessed = int(x_in.nbytes) + weight_bytes + B_pad * OUT * out_itemsize
    cost = pl.CostEstimate(flops=flops, transcendentals=0,
                           bytes_accessed=bytes_accessed)

    def call(weight_mode):
        def wspec(arr):
            if weight_mode is None:
                return pl.BlockSpec(arr.shape, lambda i: (0, 0))
            return pl.BlockSpec(arr.shape, lambda i: (0, 0), pipeline_mode=weight_mode)

        grid_spec = pltpu.PrefetchScalarGridSpec(
            num_scalar_prefetch=0,
            grid=(nb,),
            in_specs=[
                pl.BlockSpec((bb, in_size), lambda i: (i, 0)),   # x tile, pipelined DMA
                wspec(w1), wspec(b1),                            # weights/biases resident
                wspec(w2), wspec(b2),
                wspec(w3), wspec(b3),
            ],
            out_specs=pl.BlockSpec((bb, OUT), lambda i: (i, 0)),  # lane-dense output tile
        )
        return pl.pallas_call(
            qnet_kernel,
            out_shape=jax.ShapeDtypeStruct((B_pad, OUT), out_dtype),
            grid_spec=grid_spec,
            compiler_params=pltpu.CompilerParams(
                dimension_semantics=("parallel",),       # batch axis: megacore/dual-TC
                vmem_limit_bytes=vmem_limit),
            cost_estimate=cost,
        )(x_in, w1, b1, w2, b2, w3, b3)

    try:
        # Grid-constant weights: single buffer (halves resident-weight VMEM).
        out = call(pl.Buffered(1))
    except Exception:
        # TODO(synk): drop fallback once pipeline_mode=pl.Buffered(1) is guaranteed by
        # the deployed jax; default double-buffering is correct, just uses 2x weight VMEM.
        out = call(None)

    return out[:B, :logical_out_size]


def init_params(key, input_size, hidden_size, output_size):
    """Unpadded params (mimics torch nn.Linear uniform(-1/sqrt(fan_in), ...))."""
    ks = jax.random.split(key, 6)

    def lin(kw, kb, fan_in, fan_out):
        bound = 1.0 / jnp.sqrt(float(fan_in))
        w = jax.random.uniform(kw, (fan_in, fan_out), jnp.float32, -bound, bound)
        b = jax.random.uniform(kb, (1, fan_out), jnp.float32, -bound, bound)
        return w, b

    w1, b1 = lin(ks[0], ks[1], input_size, hidden_size)
    w2, b2 = lin(ks[2], ks[3], hidden_size, hidden_size)
    w3, b3 = lin(ks[4], ks[5], hidden_size, output_size)
    return {"w1": w1, "b1": b1, "w2": w2, "b2": b2, "w3": w3, "b3": b3}


def pad_params(params, *, weight_dtype=jnp.float32):
    """Build Pallas-ready parameters.

    * Hidden / output feature dims zero-padded to multiples of 128 -> every matmul
      result, intermediate and the output store are full 128-lane slabs. Padding is
      mathematically inert: padded weight rows/cols and biases are zero, so padded
      lanes stay exactly 0 through leaky_relu and contribute nothing downstream.
    * w1's input dim stays logical so x needs no feature padding (MXU pads K).
    * Weights stored in weight_dtype (bf16 recommended on v5e/v6e/v7x: native-rate
      MXU + half the weight DMA/VMEM); biases stay f32 for the f32 epilogue.
    """
    in_size, hidden = params["w1"].shape
    out_size = params["w3"].shape[1]
    H = _round_up(hidden, LANE)
    OUT = _round_up(out_size, LANE)

    def pad2(a, r, c, dt):
        return jnp.zeros((r, c), dt).at[:a.shape[0], :a.shape[1]].set(a.astype(dt))

    return {
        "w1": pad2(params["w1"], in_size, H, weight_dtype),
        "b1": pad2(params["b1"], 1, H, jnp.float32),
        "w2": pad2(params["w2"], H, H, weight_dtype),
        "b2": pad2(params["b2"], 1, H, jnp.float32),
        "w3": pad2(params["w3"], H, OUT, weight_dtype),
        "b3": pad2(params["b3"], 1, OUT, jnp.float32),
    }


def reference_forward(x, params):
    h1 = _leaky_relu(x @ params["w1"] + params["b1"])
    h2 = _leaky_relu(h1 @ params["w2"] + params["b2"])
    return h2 @ params["w3"] + params["b3"]


if __name__ == "__main__":
    key = jax.random.PRNGKey(0)
    k_x, k_p, k_x2 = jax.random.split(key, 3)

    batch, input_size, hidden_size, output_size = 2, 16, 32, 4
    x = jax.random.normal(k_x, (batch, input_size), dtype=jnp.float32)
    params = init_params(k_p, input_size, hidden_size, output_size)
    ref = reference_forward(x, params)

    # 1) f32 weights / f32 output: tight numerical check against the reference.
    padded_f32 = pad_params(params, weight_dtype=jnp.float32)
    out = linear_qnet_forward(x, padded_f32, logical_out_size=output_size)
    out = jax.block_until_ready(out)
    assert out.shape == (batch, output_size)
    assert jnp.allclose(out, ref, atol=1e-5, rtol=1e-5)

    # 2) bf16 weights + bf16 output (recommended inference config on v5e/v6e/v7x):
    #    native-rate MXU, half the weight DMA and half the output store traffic.
    padded_bf16 = pad_params(params, weight_dtype=jnp.bfloat16)
    out_bf16 = linear_qnet_forward(x, padded_bf16, logical_out_size=output_size,
                                   out_dtype=jnp.bfloat16)
    out_bf16 = jax.block_until_ready(out_bf16)
    assert out_bf16.shape == (batch, output_size)
    assert jnp.allclose(out_bf16.astype(jnp.float32), ref, atol=5e-2, rtol=5e-2)

    # 3) Multi-tile batch (grid > 1, batch not a tile multiple): exercises the
    #    "parallel" batch axis (v7x dual-TC) and batch-row padding.
    x_big = jax.random.normal(k_x2, (20, input_size), dtype=jnp.float32)
    out_big = linear_qnet_forward(x_big, padded_f32, logical_out_size=output_size)
    out_big = jax.block_until_ready(out_big)
    ref_big = reference_forward(x_big, params)
    assert out_big.shape == (20, output_size)
    assert jnp.allclose(out_big, ref_big, atol=1e-5, rtol=1e-5)

    print("KERNEL_OK")
</pallas_src>

<mosaic_0001>
module attributes {stable_mosaic.version = 11 : i64} {
  func.func @qnet_kernel(%arg0: i32, %arg1: memref<2x16xf32, #tpu.memory_space<vmem>>, %arg2: memref<16x128xf32, #tpu.memory_space<vmem>>, %arg3: memref<1x128xf32, #tpu.memory_space<vmem>>, %arg4: memref<128x128xf32, #tpu.memory_space<vmem>>, %arg5: memref<1x128xf32, #tpu.memory_space<vmem>>, %arg6: memref<128x128xf32, #tpu.memory_space<vmem>>, %arg7: memref<1x128xf32, #tpu.memory_space<vmem>>, %arg8: memref<2x128xf32, #tpu.memory_space<vmem>>) attributes {dimension_semantics = [#tpu.dimension_semantics<parallel>], iteration_bounds = array<i64: 1>, scalar_prefetch = 0 : i64, scratch_operands = 0 : i64, tpu.core_type = #tpu.core_type<tc>, window_params = [{transform_indices = @transform_0, window_bounds = array<i64: 2, 16>}, {pipeline_mode = #tpu.pipeline_mode<synchronous>, transform_indices = @transform_1, window_bounds = array<i64: 16, 128>}, {pipeline_mode = #tpu.pipeline_mode<synchronous>, transform_indices = @transform_2, window_bounds = array<i64: 1, 128>}, {pipeline_mode = #tpu.pipeline_mode<synchronous>, transform_indices = @transform_3, window_bounds = array<i64: 128, 128>}, {pipeline_mode = #tpu.pipeline_mode<synchronous>, transform_indices = @transform_4, window_bounds = array<i64: 1, 128>}, {pipeline_mode = #tpu.pipeline_mode<synchronous>, transform_indices = @transform_5, window_bounds = array<i64: 128, 128>}, {pipeline_mode = #tpu.pipeline_mode<synchronous>, transform_indices = @transform_6, window_bounds = array<i64: 1, 128>}, {transform_indices = @transform_7, window_bounds = array<i64: 2, 128>}]} {
    %c0 = arith.constant 0 : index
    %c0_0 = arith.constant 0 : index
    %0 = vector.load %arg1[%c0, %c0_0] : memref<2x16xf32, #tpu.memory_space<vmem>>, vector<2x16xf32>
    %c0_1 = arith.constant 0 : index
    %c0_2 = arith.constant 0 : index
    %1 = vector.load %arg2[%c0_1, %c0_2] : memref<16x128xf32, #tpu.memory_space<vmem>>, vector<16x128xf32>
    %cst = arith.constant dense<0.000000e+00> : vector<2x128xf32>
    %2 = tpu.matmul %0, %1, %cst {dimension_numbers = #tpu.dot_dimension_numbers<[1], [0], [0], [1], [0, 0, 1, 1], [], []>} : vector<2x16xf32>, vector<16x128xf32>, vector<2x128xf32> -> vector<2x128xf32>
    %c0_3 = arith.constant 0 : index
    %c0_4 = arith.constant 0 : index
    %3 = vector.load %arg3[%c0_3, %c0_4] : memref<1x128xf32, #tpu.memory_space<vmem>>, vector<1x128xf32>
    %4 = vector.broadcast %3 : vector<1x128xf32> to vector<2x128xf32>
    %5 = arith.addf %2, %4 : vector<2x128xf32>
    %cst_5 = arith.constant 0.000000e+00 : f32
    %6 = vector.broadcast %cst_5 : f32 to vector<2x128xf32>
    %7 = arith.cmpf ogt, %5, %6 : vector<2x128xf32>
    %cst_6 = arith.constant 0.00999999977 : f32
    %8 = vector.broadcast %cst_6 : f32 to vector<2x128xf32>
    %9 = arith.mulf %8, %5 : vector<2x128xf32>
    %10 = arith.select %7, %5, %9 : vector<2x128xi1>, vector<2x128xf32>
    %c0_7 = arith.constant 0 : index
    %c0_8 = arith.constant 0 : index
    %11 = vector.load %arg4[%c0_7, %c0_8] : memref<128x128xf32, #tpu.memory_space<vmem>>, vector<128x128xf32>
    %cst_9 = arith.constant dense<0.000000e+00> : vector<2x128xf32>
    %12 = tpu.matmul %10, %11, %cst_9 {dimension_numbers = #tpu.dot_dimension_numbers<[1], [0], [0], [1], [0, 0, 1, 1], [], []>} : vector<2x128xf32>, vector<128x128xf32>, vector<2x128xf32> -> vector<2x128xf32>
    %c0_10 = arith.constant 0 : index
    %c0_11 = arith.constant 0 : index
    %13 = vector.load %arg5[%c0_10, %c0_11] : memref<1x128xf32, #tpu.memory_space<vmem>>, vector<1x128xf32>
    %14 = vector.broadcast %13 : vector<1x128xf32> to vector<2x128xf32>
    %15 = arith.addf %12, %14 : vector<2x128xf32>
    %cst_12 = arith.constant 0.000000e+00 : f32
    %16 = vector.broadcast %cst_12 : f32 to vector<2x128xf32>
    %17 = arith.cmpf ogt, %15, %16 : vector<2x128xf32>
    %cst_13 = arith.constant 0.00999999977 : f32
    %18 = vector.broadcast %cst_13 : f32 to vector<2x128xf32>
    %19 = arith.mulf %18, %15 : vector<2x128xf32>
    %20 = arith.select %17, %15, %19 : vector<2x128xi1>, vector<2x128xf32>
    %c0_14 = arith.constant 0 : index
    %c0_15 = arith.constant 0 : index
    %21 = vector.load %arg6[%c0_14, %c0_15] : memref<128x128xf32, #tpu.memory_space<vmem>>, vector<128x128xf32>
    %cst_16 = arith.constant dense<0.000000e+00> : vector<2x128xf32>
    %22 = tpu.matmul %20, %21, %cst_16 {dimension_numbers = #tpu.dot_dimension_numbers<[1], [0], [0], [1], [0, 0, 1, 1], [], []>} : vector<2x128xf32>, vector<128x128xf32>, vector<2x128xf32> -> vector<2x128xf32>
    %c0_17 = arith.constant 0 : index
    %c0_18 = arith.constant 0 : index
    %23 = vector.load %arg7[%c0_17, %c0_18] : memref<1x128xf32, #tpu.memory_space<vmem>>, vector<1x128xf32>
    %24 = vector.broadcast %23 : vector<1x128xf32> to vector<2x128xf32>
    %25 = arith.addf %22, %24 : vector<2x128xf32>
    %c0_19 = arith.constant 0 : index
    %c0_20 = arith.constant 0 : index
    %26 = vector.load %arg8[%c0_19, %c0_20] : memref<2x128xf32, #tpu.memory_space<vmem>>, vector<2x128xf32>
    tpu.vector_store %arg8[%c0_19, %c0_20], %25 {strides = array<i32>} : memref<2x128xf32, #tpu.memory_space<vmem>>, vector<2x128xf32>,
    return
  }
  func.func @transform_0(%arg0: i32) -> (i32, i32) {
    %c0_i32 = arith.constant 0 : i32
    %c0_i32_0 = arith.constant 0 : i32
    return %arg0, %c0_i32 : i32, i32
  }
  func.func @transform_1(%arg0: i32) -> (i32, i32) {
    %c0_i32 = arith.constant 0 : i32
    %c0_i32_0 = arith.constant 0 : i32
    %c0_i32_1 = arith.constant 0 : i32
    return %c0_i32, %c0_i32_0 : i32, i32
  }
  func.func @transform_2(%arg0: i32) -> (i32, i32) {
    %c0_i32 = arith.constant 0 : i32
    %c0_i32_0 = arith.constant 0 : i32
    %c0_i32_1 = arith.constant 0 : i32
    return %c0_i32, %c0_i32_0 : i32, i32
  }
  func.func @transform_3(%arg0: i32) -> (i32, i32) {
    %c0_i32 = arith.constant 0 : i32
    %c0_i32_0 = arith.constant 0 : i32
    %c0_i32_1 = arith.constant 0 : i32
    return %c0_i32, %c0_i32_0 : i32, i32
  }
  func.func @transform_4(%arg0: i32) -> (i32, i32) {
    %c0_i32 = arith.constant 0 : i32
    %c0_i32_0 = arith.constant 0 : i32
    %c0_i32_1 = arith.constant 0 : i32
    return %c0_i32, %c0_i32_0 : i32, i32
  }
  func.func @transform_5(%arg0: i32) -> (i32, i32) {
    %c0_i32 = arith.constant 0 : i32
    %c0_i32_0 = arith.constant 0 : i32
    %c0_i32_1 = arith.constant 0 : i32
    return %c0_i32, %c0_i32_0 : i32, i32
  }
  func.func @transform_6(%arg0: i32) -> (i32, i32) {
    %c0_i32 = arith.constant 0 : i32
    %c0_i32_0 = arith.constant 0 : i32
    %c0_i32_1 = arith.constant 0 : i32
    return %c0_i32, %c0_i32_0 : i32, i32
  }
  func.func @transform_7(%arg0: i32) -> (i32, i32) {
    %c0_i32 = arith.constant 0 : i32
    %c0_i32_0 = arith.constant 0 : i32
    return %arg0, %c0_i32 : i32, i32
  }
}

module attributes {stable_mosaic.version = 11 : i64} {
  func.func @qnet_kernel(%arg0: i32, %arg1: memref<2x16xf32, #tpu.memory_space<vmem>>, %arg2: memref<16x128xf32, #tpu.memory_space<vmem>>, %arg3: memref<1x128xf32, #tpu.memory_space<vmem>>, %arg4: memref<128x128xf32, #tpu.memory_space<vmem>>, %arg5: memref<1x128xf32, #tpu.memory_space<vmem>>, %arg6: memref<128x128xf32, #tpu.memory_space<vmem>>, %arg7: memref<1x128xf32, #tpu.memory_space<vmem>>, %arg8: memref<2x128xf32, #tpu.memory_space<vmem>>) attributes {dimension_semantics = [#tpu.dimension_semantics<parallel>], iteration_bounds = array<i64: 1>, scalar_prefetch = 0 : i64, scratch_operands = 0 : i64, tpu.core_type = #tpu.core_type<tc>, window_params = [{transform_indices = @transform_0, window_bounds = array<i64: 2, 16>}, {pipeline_mode = #tpu.pipeline_mode<synchronous>, transform_indices = @transform_1, window_bounds = array<i64: 16, 128>}, {pipeline_mode = #tpu.pipeline_mode<synchronous>, transform_indices = @transform_2, window_bounds = array<i64: 1, 128>}, {pipeline_mode = #tpu.pipeline_mode<synchronous>, transform_indices = @transform_3, window_bounds = array<i64: 128, 128>}, {pipeline_mode = #tpu.pipeline_mode<synchronous>, transform_indices = @transform_4, window_bounds = array<i64: 1, 128>}, {pipeline_mode = #tpu.pipeline_mode<synchronous>, transform_indices = @transform_5, window_bounds = array<i64: 128, 128>}, {pipeline_mode = #tpu.pipeline_mode<synchronous>, transform_indices = @transform_6, window_bounds = array<i64: 1, 128>}, {transform_indices = @transform_7, window_bounds = array<i64: 2, 128>}]} {
    %c0 = arith.constant 0 : index
    %c0_0 = arith.constant 0 : index
    %0 = vector.load %arg1[%c0, %c0_0] : memref<2x16xf32, #tpu.memory_space<vmem>>, vector<2x16xf32>
    %c0_1 = arith.constant 0 : index
    %c0_2 = arith.constant 0 : index
    %1 = vector.load %arg2[%c0_1, %c0_2] : memref<16x128xf32, #tpu.memory_space<vmem>>, vector<16x128xf32>
    %cst = arith.constant dense<0.000000e+00> : vector<2x128xf32>
    %2 = tpu.matmul %0, %1, %cst {dimension_numbers = #tpu.dot_dimension_numbers<[1], [0], [0], [1], [0, 0, 1, 1], [], []>} : vector<2x16xf32>, vector<16x128xf32>, vector<2x128xf32> -> vector<2x128xf32>
    %c0_3 = arith.constant 0 : index
    %c0_4 = arith.constant 0 : index
    %3 = vector.load %arg3[%c0_3, %c0_4] : memref<1x128xf32, #tpu.memory_space<vmem>>, vector<1x128xf32>
    %4 = vector.broadcast %3 : vector<1x128xf32> to vector<2x128xf32>
    %5 = arith.addf %2, %4 : vector<2x128xf32>
    %cst_5 = arith.constant 0.000000e+00 : f32
    %6 = vector.broadcast %cst_5 : f32 to vector<2x128xf32>
    %7 = arith.cmpf ogt, %5, %6 : vector<2x128xf32>
    %cst_6 = arith.constant 0.00999999977 : f32
    %8 = vector.broadcast %cst_6 : f32 to vector<2x128xf32>
    %9 = arith.mulf %8, %5 : vector<2x128xf32>
    %10 = arith.select %7, %5, %9 : vector<2x128xi1>, vector<2x128xf32>
    %c0_7 = arith.constant 0 : index
    %c0_8 = arith.constant 0 : index
    %11 = vector.load %arg4[%c0_7, %c0_8] : memref<128x128xf32, #tpu.memory_space<vmem>>, vector<128x128xf32>
    %cst_9 = arith.constant dense<0.000000e+00> : vector<2x128xf32>
    %12 = tpu.matmul %10, %11, %cst_9 {dimension_numbers = #tpu.dot_dimension_numbers<[1], [0], [0], [1], [0, 0, 1, 1], [], []>} : vector<2x128xf32>, vector<128x128xf32>, vector<2x128xf32> -> vector<2x128xf32>
    %c0_10 = arith.constant 0 : index
    %c0_11 = arith.constant 0 : index
    %13 = vector.load %arg5[%c0_10, %c0_11] : memref<1x128xf32, #tpu.memory_space<vmem>>, vector<1x128xf32>
    %14 = vector.broadcast %13 : vector<1x128xf32> to vector<2x128xf32>
    %15 = arith.addf %12, %14 : vector<2x128xf32>
    %cst_12 = arith.constant 0.000000e+00 : f32
    %16 = vector.broadcast %cst_12 : f32 to vector<2x128xf32>
    %17 = arith.cmpf ogt, %15, %16 : vector<2x128xf32>
    %cst_13 = arith.constant 0.00999999977 : f32
    %18 = vector.broadcast %cst_13 : f32 to vector<2x128xf32>
    %19 = arith.mulf %18, %15 : vector<2x128xf32>
    %20 = arith.select %17, %15, %19 : vector<2x128xi1>, vector<2x128xf32>
    %c0_14 = arith.constant 0 : index
    %c0_15 = arith.constant 0 : index
    %21 = vector.load %arg6[%c0_14, %c0_15] : memref<128x128xf32, #tpu.memory_space<vmem>>, vector<128x128xf32>
    %cst_16 = arith.constant dense<0.000000e+00> : vector<2x128xf32>
    %22 = tpu.matmul %20, %21, %cst_16 {dimension_numbers = #tpu.dot_dimension_numbers<[1], [0], [0], [1], [0, 0, 1, 1], [], []>} : vector<2x128xf32>, vector<128x128xf32>, vector<2x128xf32> -> vector<2x128xf32>
    %c0_17 = arith.constant 0 : index
    %c0_18 = arith.constant 0 : index
    %23 = vector.load %arg7[%c0_17, %c0_18] : memref<1x128xf32, #tpu.memory_space<vmem>>, vector<1x128xf32>
    %24 = vector.broadcast %23 : vector<1x128xf32> to vector<2x128xf32>
    %25 = arith.addf %22, %24 : vector<2x128xf32>
    %c0_19 = arith.constant 0 : index
    %c0_20 = arith.constant 0 : index
    %26 = vector.load %arg8[%c0_19, %c0_20] : memref<2x128xf32, #tpu.memory_space<vmem>>, vector<2x128xf32>
    tpu.vector_store %arg8[%c0_19, %c0_20], %25 {strides = array<i32>} : memref<2x128xf32, #tpu.memory_space<vmem>>, vector<2x128xf32>,
    return
  }
  func.func @transform_0(%arg0: i32) -> (i32, i32) {
    %c0_i32 = arith.constant 0 : i32
    %c0_i32_0 = arith.constant 0 : i32
    return %arg0, %c0_i32 : i32, i32
  }
  func.func @transform_1(%arg0: i32) -> (i32, i32) {
    %c0_i32 = arith.constant 0 : i32
    %c0_i32_0 = arith.constant 0 : i32
    %c0_i32_1 = arith.constant 0 : i32
    return %c0_i32, %c0_i32_0 : i32, i32
  }
  func.func @transform_2(%arg0: i32) -> (i32, i32) {
    %c0_i32 = arith.constant 0 : i32
    %c0_i32_0 = arith.constant 0 : i32
    %c0_i32_1 = arith.constant 0 : i32
    return %c0_i32, %c0_i32_0 : i32, i32
  }
  func.func @transform_3(%arg0: i32) -> (i32, i32) {
    %c0_i32 = arith.constant 0 : i32
    %c0_i32_0 = arith.constant 0 : i32
    %c0_i32_1 = arith.constant 0 : i32
    return %c0_i32, %c0_i32_0 : i32, i32
  }
  func.func @transform_4(%arg0: i32) -> (i32, i32) {
    %c0_i32 = arith.constant 0 : i32
    %c0_i32_0 = arith.constant 0 : i32
    %c0_i32_1 = arith.constant 0 : i32
    return %c0_i32, %c0_i32_0 : i32, i32
  }
  func.func @transform_5(%arg0: i32) -> (i32, i32) {
    %c0_i32 = arith.constant 0 : i32
    %c0_i32_0 = arith.constant 0 : i32
    %c0_i32_1 = arith.constant 0 : i32
    return %c0_i32, %c0_i32_0 : i32, i32
  }
  func.func @transform_6(%arg0: i32) -> (i32, i32) {
    %c0_i32 = arith.constant 0 : i32
    %c0_i32_0 = arith.constant 0 : i32
    %c0_i32_1 = arith.constant 0 : i32
    return %c0_i32, %c0_i32_0 : i32, i32
  }
  func.func @transform_7(%arg0: i32) -> (i32, i32) {
    %c0_i32 = arith.constant 0 : i32
    %c0_i32_0 = arith.constant 0 : i32
    return %arg0, %c0_i32 : i32, i32
  }
}

</mosaic_0001>

<llo_original>
// kernel: tpu_custom_call.1
$region0: #{tpu_custom_call.1}
  #allocation0 [shape = 'u32[]', space=smem, size = 0x4, offset = 0x4, fixed_abs, tag = 'smem constant byte address 0x4 - core index']
  #allocation1 [shape = 'u32[144,128]{1,0:T(1,128)}', space=vmem, size = 0x12000, scoped, tag = 'internal scratch']
  %s0 = inlined_call_operand.hbm [shape: f32[2,16], index: 0, kind: input, shape index: {}]
  %s1 = inlined_call_operand.hbm [shape: f32[16,128], index: 1, kind: input, shape index: {}]
  %s2 = inlined_call_operand.vmem [shape: f32[1,128], index: 2, kind: input, shape index: {}]
  %s3 = inlined_call_operand.hbm [shape: f32[128,128], index: 3, kind: input, shape index: {}]
  %s4 = inlined_call_operand.vmem [shape: f32[1,128], index: 4, kind: input, shape index: {}]
  %s5 = inlined_call_operand.hbm [shape: f32[128,128], index: 5, kind: input, shape index: {}]
  %s6 = inlined_call_operand.vmem [shape: f32[1,128], index: 6, kind: input, shape index: {}]
  %s7 = inlined_call_operand.hbm [shape: f32[2,128], index: 7, kind: output, shape index: {}]
  %s8 = sld [smem:[#allocation0]]
  $region54: #{tpu_custom_call.1} parent=0
    _
  %s10 = ssub.s32 1, %s8
  %s11 = scalar_select 0, %s10, %s8
  $region1: #{tpu_custom_call.1} parent=0
    #allocation2 [shape = 'u8[1024]{0}', space=vmem, size = 0x400, scoped, tag = 'input window, operand 0, single buffered']
    #allocation3 [shape = 's32[1]{0}', space=sflag, size = 0x4, scoped, tag = 'scoped memory for tpu_custom_call.1']
    #allocation4 [shape = 's32[1]{0}', space=sflag, size = 0x4, scoped, tag = 'scoped memory for tpu_custom_call.1']
    #allocation5 [shape = 'u8[8192]{0}', space=vmem, size = 0x2000, scoped, tag = 'input window, operand 1, single buffered']
    #allocation6 [shape = 's32[1]{0}', space=sflag, size = 0x4, scoped, tag = 'scoped memory for tpu_custom_call.1']
    #allocation7 [shape = 'u8[65536]{0}', space=vmem, size = 0x10000, scoped, tag = 'input window, operand 3, single buffered']
    #allocation8 [shape = 'u8[65536]{0}', space=vmem, size = 0x10000, scoped, tag = 'input window, operand 5, single buffered']
    #allocation9 [shape = 's32[1]{0}', space=sflag, size = 0x4, scoped, tag = 'scoped memory for tpu_custom_call.1']
    #allocation10 [shape = 'u8[1024]{0}', space=vmem, size = 0x400, scoped, tag = 'output window, operand 0, single buffered']
    %12 = vsyncpa [#allocation3], 0
    %13 = vsyncpa [#allocation6], 0
    %14 = vsyncpa [#allocation9], 0
    %15 = vsyncpa [#allocation4], 0
    // Predicated region
    $region2: #{tpu_custom_call.1} parent=1 // pred_check
      _
    $region3: #{tpu_custom_call.1} parent=1 // pred_check_branch
      %17 = sbr.rel (0) target = $region5
    $region4: #{tpu_custom_call.1} parent=1 // pred_region
      %s19 = ssub.s32 32, 32
      %20 = vsyncadd [#allocation3], %s19
      %s22 = sshll.u32 [#allocation2], 4
      %s23 = int_to_ptr.vmem [resolvable:$true] %s22
      %25 = dma.hbm_to_vmem [thread:$0]  %s0, 32, %s23, [#allocation3]
    $region5: #{tpu_custom_call.1} parent=1 // pred_fallthru
      _
    // Predicated region
    $region6: #{tpu_custom_call.1} parent=1 // pred_check
      _
    $region7: #{tpu_custom_call.1} parent=1 // pred_check_branch
      %27 = sbr.rel (0) target = $region9
    $region8: #{tpu_custom_call.1} parent=1 // pred_region
      %s29 = ssub.s32 256, 256
      %30 = vsyncadd [#allocation6], %s29
      %s31 = sshll.u32 [#allocation5], 4
      %s32 = int_to_ptr.vmem [resolvable:$true] %s31
      %37 = dma.hbm_to_vmem [thread:$0]  %s1, 256, %s32, [#allocation6], 128, 128, 8
    $region9: #{tpu_custom_call.1} parent=1 // pred_fallthru
      _
    // Predicated region
    $region10: #{tpu_custom_call.1} parent=1 // pred_check
      _
    $region11: #{tpu_custom_call.1} parent=1 // pred_check_branch
      %39 = sbr.rel (0) target = $region13
    $region12: #{tpu_custom_call.1} parent=1 // pred_region
      _
    $region13: #{tpu_custom_call.1} parent=1 // pred_fallthru
      _
    // Predicated region
    $region14: #{tpu_custom_call.1} parent=1 // pred_check
      _
    $region15: #{tpu_custom_call.1} parent=1 // pred_check_branch
      %41 = sbr.rel (0) target = $region17
    $region16: #{tpu_custom_call.1} parent=1 // pred_region
      %s43 = ssub.s32 2048, 2048
      %44 = vsyncadd [#allocation6], %s43
      %s45 = sshll.u32 [#allocation7], 4
      %s46 = int_to_ptr.vmem [resolvable:$true] %s45
      %51 = dma.hbm_to_vmem [thread:$0]  %s3, 2048, %s46, [#allocation6], 128, 128, 8
    $region17: #{tpu_custom_call.1} parent=1 // pred_fallthru
      _
    // Predicated region
    $region18: #{tpu_custom_call.1} parent=1 // pred_check
      _
    $region19: #{tpu_custom_call.1} parent=1 // pred_check_branch
      %53 = sbr.rel (0) target = $region21
    $region20: #{tpu_custom_call.1} parent=1 // pred_region
      _
    $region21: #{tpu_custom_call.1} parent=1 // pred_fallthru
      _
    // Predicated region
    $region22: #{tpu_custom_call.1} parent=1 // pred_check
      _
    $region23: #{tpu_custom_call.1} parent=1 // pred_check_branch
      %55 = sbr.rel (0) target = $region25
    $region24: #{tpu_custom_call.1} parent=1 // pred_region
      %s57 = ssub.s32 2048, 2048
      %58 = vsyncadd [#allocation9], %s57
      %s59 = sshll.u32 [#allocation8], 4
      %s60 = int_to_ptr.vmem [resolvable:$true] %s59
      %65 = dma.hbm_to_vmem [thread:$0]  %s5, 2048, %s60, [#allocation9], 128, 128, 8
    $region25: #{tpu_custom_call.1} parent=1 // pred_fallthru
      _
    // Predicated region
    $region26: #{tpu_custom_call.1} parent=1 // pred_check
      _
    $region27: #{tpu_custom_call.1} parent=1 // pred_check_branch
      %67 = sbr.rel (0) target = $region29
    $region28: #{tpu_custom_call.1} parent=1 // pred_region
      _
    $region29: #{tpu_custom_call.1} parent=1 // pred_fallthru
      _
    // Predicated region
    $region30: #{tpu_custom_call.1} parent=1 // pred_check
      _
    $region31: #{tpu_custom_call.1} parent=1 // pred_check_branch
      %69 = sbr.rel (0) target = $region33
    $region32: #{tpu_custom_call.1} parent=1 // pred_region
      %70 = dma.done [#allocation3], 32
    $region33: #{tpu_custom_call.1} parent=1 // pred_fallthru
      _
    // Predicated region
    $region34: #{tpu_custom_call.1} parent=1 // pred_check
      _
    $region35: #{tpu_custom_call.1} parent=1 // pred_check_branch
      %72 = sbr.rel (0) target = $region37
    $region36: #{tpu_custom_call.1} parent=1 // pred_region
      %73 = dma.done [#allocation6], 256
    $region37: #{tpu_custom_call.1} parent=1 // pred_fallthru
      _
    // Predicated region
    $region38: #{tpu_custom_call.1} parent=1 // pred_check
      _
    $region39: #{tpu_custom_call.1} parent=1 // pred_check_branch
      %75 = sbr.rel (0) target = $region41
    $region40: #{tpu_custom_call.1} parent=1 // pred_region
      %76 = dma.done [#allocation6], 2048
    $region41: #{tpu_custom_call.1} parent=1 // pred_fallthru
      _
    // Predicated region
    $region42: #{tpu_custom_call.1} parent=1 // pred_check
      _
    $region43: #{tpu_custom_call.1} parent=1 // pred_check_branch
      %78 = sbr.rel (0) target = $region45
    $region44: #{tpu_custom_call.1} parent=1 // pred_region
      %79 = dma.done [#allocation9], 2048
    $region45: #{tpu_custom_call.1} parent=1 // pred_fallthru
      _
    %v80 = vld [vmem:[#allocation2] sm:$0x3]
    %v81 = vld [vmem:[#allocation5] sm:$0xff]
    %v82 = vld [vmem:[#allocation5 + $0x8] sm:$0xff]
    %v83 = vld [vmem:[%s2] sm:$0x1]
    %v85 = vlaneseq
    %v86 = vshrl.u32 %v85, 7
    %v87 = vsub.s32 0, %v86
    %v88 = vrot.slane %v83, %v87
    %vm90 = vcmask 130048
    %v92 = vsel %vm90, %v80, 0
    %94 = vmatprep.subr.mxu0 0.0
    %95 = vmatpush1.msra.mxu0 0.0
    %96 = vmatprep.subr.mxu0 0.0
    %97 = vmatpush1.msra.mxu0 0.0
    %98 = vmatprep.subr.mxu0 0.0
    %99 = vmatpush1.msra.mxu0 0.0
    %100 = vmatprep.subr.mxu0 0.0
    %101 = vmatpush1.msra.mxu0 0.0
    %102 = vmatprep.subr.mxu0 0.0
    %103 = vmatpush1.msra.mxu0 0.0
    %104 = vmatprep.subr.mxu0 0.0
    %105 = vmatpush1.msra.mxu0 0.0
    %106 = vmatprep.subr.mxu0 0.0
    %107 = vmatpush1.msra.mxu0 0.0
    %108 = vmatprep.subr.mxu0 0.0
    %109 = vmatpush1.msra.mxu0 0.0
    %110 = vmatprep.subr.mxu0 0.0
    %111 = vmatpush1.msra.mxu0 0.0
    %112 = vmatprep.subr.mxu0 0.0
    %113 = vmatpush1.msra.mxu0 0.0
    %114 = vmatprep.subr.mxu0 0.0
    %115 = vmatpush1.msra.mxu0 0.0
    %116 = vmatprep.subr.mxu0 0.0
    %117 = vmatpush1.msra.mxu0 0.0
    %118 = vmatprep.subr.mxu0 0.0
    %119 = vmatpush1.msra.mxu0 0.0
    %120 = vmatprep.subr.mxu0 0.0
    %121 = vmatpush1.msra.mxu0 0.0
    %122 = vmatprep.subr.mxu0 0.0
    %123 = vmatpush1.msra.mxu0 %v82
    %124 = vmatprep.subr.mxu0 0.0
    %125 = vmatpush1.msra.mxu0 %v81
    %126 = vmatprep.subr.mxu0 0.0
    %127 = vmatpush2.msra.mxu0 0.0
    %128 = vmatprep.subr.mxu0 0.0
    %129 = vmatpush2.msra.mxu0 0.0
    %130 = vmatprep.subr.mxu0 0.0
    %131 = vmatpush2.msra.mxu0 0.0
    %132 = vmatprep.subr.mxu0 0.0
    %133 = vmatpush2.msra.mxu0 0.0
    %134 = vmatprep.subr.mxu0 0.0
    %135 = vmatpush2.msra.mxu0 0.0
    %136 = vmatprep.subr.mxu0 0.0
    %137 = vmatpush2.msra.mxu0 0.0
    %138 = vmatprep.subr.mxu0 0.0
    %139 = vmatpush2.msra.mxu0 0.0
    %140 = vmatprep.subr.mxu0 0.0
    %141 = vmatpush2.msra.mxu0 0.0
    %142 = vmatprep.subr.mxu0 0.0
    %143 = vmatpush2.msra.mxu0 0.0
    %144 = vmatprep.subr.mxu0 0.0
    %145 = vmatpush2.msra.mxu0 0.0
    %146 = vmatprep.subr.mxu0 0.0
    %147 = vmatpush2.msra.mxu0 0.0
    %148 = vmatprep.subr.mxu0 0.0
    %149 = vmatpush2.msra.mxu0 0.0
    %150 = vmatprep.subr.mxu0 0.0
    %151 = vmatpush2.msra.mxu0 0.0
    %152 = vmatprep.subr.mxu0 0.0
    %153 = vmatpush2.msra.mxu0 0.0
    %154 = vmatprep.subr.mxu0 0.0
    %155 = vmatpush2.msra.mxu0 0.0
    %156 = vmatprep.subr.mxu0 0.0
    %157 = vmatpush2.msra.mxu0 0.0
    %158 = vmatprep.mubr.f32.mxu0 0.0
    %159 = vmatmul.mubr.f32.gmra.mxu0 %v92
    %v160 = vpop.f32.mrf.mxu0
    %v161 = vadd.f32 %v88, %v160
    %v162 = vpop.f32.mrf.mxu0
    %163 = vdwg.mxu0
    %vm164 = vcmp.gt.f32.partialorder %v161, 0.0
    %v165 = vmul.f32 %v161, 0.01
    %v166 = vsel %vm164, %v161, %v165
    %v167 = vld [vmem:[#allocation7] sm:$0xff]
    %v168 = vld [vmem:[#allocation7 + $0x8] sm:$0xff]
    %v169 = vld [vmem:[#allocation7 + $0x10] sm:$0xff]
    %v170 = vld [vmem:[#allocation7 + $0x18] sm:$0xff]
    %v171 = vld [vmem:[#allocation7 + $0x20] sm:$0xff]
    %v172 = vld [vmem:[#allocation7 + $0x28] sm:$0xff]
    %v173 = vld [vmem:[#allocation7 + $0x30] sm:$0xff]
    %v174 = vld [vmem:[#allocation7 + $0x38] sm:$0xff]
    %v175 = vld [vmem:[#allocation7 + $0x40] sm:$0xff]
    %v176 = vld [vmem:[#allocation7 + $0x48] sm:$0xff]
    %v177 = vld [vmem:[#allocation7 + $0x50] sm:$0xff]
    %v178 = vld [vmem:[#allocation7 + $0x58] sm:$0xff]
    %v179 = vld [vmem:[#allocation7 + $0x60] sm:$0xff]
    %v180 = vld [vmem:[#allocation7 + $0x68] sm:$0xff]
    %v181 = vld [vmem:[#allocation7 + $0x70] sm:$0xff]
    %v182 = vld [vmem:[#allocation7 + $0x78] sm:$0xff]
    %v183 = vld [vmem:[%s4] sm:$0x1]
    %v185 = vlaneseq
    %v186 = vshrl.u32 %v185, 7
    %v187 = vsub.s32 0, %v186
    %v188 = vrot.slane %v183, %v187
    %190 = vmatprep.subr.mxu0 0.0
    %191 = vmatpush1.msra.mxu0 %v182
    %192 = vmatprep.subr.mxu0 0.0
    %193 = vmatpush1.msra.mxu0 %v181
    %194 = vmatprep.subr.mxu0 0.0
    %195 = vmatpush1.msra.mxu0 %v180
    %196 = vmatprep.subr.mxu0 0.0
    %197 = vmatpush1.msra.mxu0 %v179
    %198 = vmatprep.subr.mxu0 0.0
    %199 = vmatpush1.msra.mxu0 %v178
    %200 = vmatprep.subr.mxu0 0.0
    %201 = vmatpush1.msra.mxu0 %v177
    %202 = vmatprep.subr.mxu0 0.0
    %203 = vmatpush1.msra.mxu0 %v176
    %204 = vmatprep.subr.mxu0 0.0
    %205 = vmatpush1.msra.mxu0 %v175
    %206 = vmatprep.subr.mxu0 0.0
    %207 = vmatpush1.msra.mxu0 %v174
    %208 = vmatprep.subr.mxu0 0.0
    %209 = vmatpush1.msra.mxu0 %v173
    %210 = vmatprep.subr.mxu0 0.0
    %211 = vmatpush1.msra.mxu0 %v172
    %212 = vmatprep.subr.mxu0 0.0
    %213 = vmatpush1.msra.mxu0 %v171
    %214 = vmatprep.subr.mxu0 0.0
    %215 = vmatpush1.msra.mxu0 %v170
    %216 = vmatprep.subr.mxu0 0.0
    %217 = vmatpush1.msra.mxu0 %v169
    %218 = vmatprep.subr.mxu0 0.0
    %219 = vmatpush1.msra.mxu0 %v168
    %220 = vmatprep.subr.mxu0 0.0
    %221 = vmatpush1.msra.mxu0 %v167
    %222 = vmatprep.subr.mxu0 0.0
    %223 = vmatpush2.msra.mxu0 0.0
    %224 = vmatprep.subr.mxu0 0.0
    %225 = vmatpush2.msra.mxu0 0.0
    %226 = vmatprep.subr.mxu0 0.0
    %227 = vmatpush2.msra.mxu0 0.0
    %228 = vmatprep.subr.mxu0 0.0
    %229 = vmatpush2.msra.mxu0 0.0
    %230 = vmatprep.subr.mxu0 0.0
    %231 = vmatpush2.msra.mxu0 0.0
    %232 = vmatprep.subr.mxu0 0.0
    %233 = vmatpush2.msra.mxu0 0.0
    %234 = vmatprep.subr.mxu0 0.0
    %235 = vmatpush2.msra.mxu0 0.0
    %236 = vmatprep.subr.mxu0 0.0
    %237 = vmatpush2.msra.mxu0 0.0
    %238 = vmatprep.subr.mxu0 0.0
    %239 = vmatpush2.msra.mxu0 0.0
    %240 = vmatprep.subr.mxu0 0.0
    %241 = vmatpush2.msra.mxu0 0.0
    %242 = vmatprep.subr.mxu0 0.0
    %243 = vmatpush2.msra.mxu0 0.0
    %244 = vmatprep.subr.mxu0 0.0
    %245 = vmatpush2.msra.mxu0 0.0
    %246 = vmatprep.subr.mxu0 0.0
    %247 = vmatpush2.msra.mxu0 0.0
    %248 = vmatprep.subr.mxu0 0.0
    %249 = vmatpush2.msra.mxu0 0.0
    %250 = vmatprep.subr.mxu0 0.0
    %251 = vmatpush2.msra.mxu0 0.0
    %252 = vmatprep.subr.mxu0 0.0
    %253 = vmatpush2.msra.mxu0 0.0
    %254 = vmatprep.mubr.f32.mxu0 0.0
    %255 = vmatmul.mubr.f32.gmra.mxu0 %v166
    %v256 = vpop.f32.mrf.mxu0
    %v257 = vadd.f32 %v188, %v256
    %v258 = vpop.f32.mrf.mxu0
    %259 = vdwg.mxu0
    %vm260 = vcmp.gt.f32.partialorder %v257, 0.0
    %v261 = vmul.f32 %v257, 0.01
    %v262 = vsel %vm260, %v257, %v261
    %v263 = vld [vmem:[#allocation8] sm:$0xff]
    %v264 = vld [vmem:[#allocation8 + $0x8] sm:$0xff]
    %v265 = vld [vmem:[#allocation8 + $0x10] sm:$0xff]
    %v266 = vld [vmem:[#allocation8 + $0x18] sm:$0xff]
    %v267 = vld [vmem:[#allocation8 + $0x20] sm:$0xff]
    %v268 = vld [vmem:[#allocation8 + $0x28] sm:$0xff]
    %v269 = vld [vmem:[#allocation8 + $0x30] sm:$0xff]
    %v270 = vld [vmem:[#allocation8 + $0x38] sm:$0xff]
    %v271 = vld [vmem:[#allocation8 + $0x40] sm:$0xff]
    %v272 = vld [vmem:[#allocation8 + $0x48] sm:$0xff]
    %v273 = vld [vmem:[#allocation8 + $0x50] sm:$0xff]
    %v274 = vld [vmem:[#allocation8 + $0x58] sm:$0xff]
    %v275 = vld [vmem:[#allocation8 + $0x60] sm:$0xff]
    %v276 = vld [vmem:[#allocation8 + $0x68] sm:$0xff]
    %v277 = vld [vmem:[#allocation8 + $0x70] sm:$0xff]
    %v278 = vld [vmem:[#allocation8 + $0x78] sm:$0xff]
    %v279 = vld [vmem:[%s6] sm:$0x1]
    %v281 = vlaneseq
    %v282 = vshrl.u32 %v281, 7
    %v283 = vsub.s32 0, %v282
    %v284 = vrot.slane %v279, %v283
    %286 = vmatprep.subr.mxu0 0.0
    %287 = vmatpush1.msra.mxu0 %v278
    %288 = vmatprep.subr.mxu0 0.0
    %289 = vmatpush1.msra.mxu0 %v277
    %290 = vmatprep.subr.mxu0 0.0
    %291 = vmatpush1.msra.mxu0 %v276
    %292 = vmatprep.subr.mxu0 0.0
    %293 = vmatpush1.msra.mxu0 %v275
    %294 = vmatprep.subr.mxu0 0.0
    %295 = vmatpush1.msra.mxu0 %v274
    %296 = vmatprep.subr.mxu0 0.0
    %297 = vmatpush1.msra.mxu0 %v273
    %298 = vmatprep.subr.mxu0 0.0
    %299 = vmatpush1.msra.mxu0 %v272
    %300 = vmatprep.subr.mxu0 0.0
    %301 = vmatpush1.msra.mxu0 %v271
    %302 = vmatprep.subr.mxu0 0.0
    %303 = vmatpush1.msra.mxu0 %v270
    %304 = vmatprep.subr.mxu0 0.0
    %305 = vmatpush1.msra.mxu0 %v269
    %306 = vmatprep.subr.mxu0 0.0
    %307 = vmatpush1.msra.mxu0 %v268
    %308 = vmatprep.subr.mxu0 0.0
    %309 = vmatpush1.msra.mxu0 %v267
    %310 = vmatprep.subr.mxu0 0.0
    %311 = vmatpush1.msra.mxu0 %v266
    %312 = vmatprep.subr.mxu0 0.0
    %313 = vmatpush1.msra.mxu0 %v265
    %314 = vmatprep.subr.mxu0 0.0
    %315 = vmatpush1.msra.mxu0 %v264
    %316 = vmatprep.subr.mxu0 0.0
    %317 = vmatpush1.msra.mxu0 %v263
    %318 = vmatprep.subr.mxu0 0.0
    %319 = vmatpush2.msra.mxu0 0.0
    %320 = vmatprep.subr.mxu0 0.0
    %321 = vmatpush2.msra.mxu0 0.0
    %322 = vmatprep.subr.mxu0 0.0
    %323 = vmatpush2.msra.mxu0 0.0
    %324 = vmatprep.subr.mxu0 0.0
    %325 = vmatpush2.msra.mxu0 0.0
    %326 = vmatprep.subr.mxu0 0.0
    %327 = vmatpush2.msra.mxu0 0.0
    %328 = vmatprep.subr.mxu0 0.0
    %329 = vmatpush2.msra.mxu0 0.0
    %330 = vmatprep.subr.mxu0 0.0
    %331 = vmatpush2.msra.mxu0 0.0
    %332 = vmatprep.subr.mxu0 0.0
    %333 = vmatpush2.msra.mxu0 0.0
    %334 = vmatprep.subr.mxu0 0.0
    %335 = vmatpush2.msra.mxu0 0.0
    %336 = vmatprep.subr.mxu0 0.0
    %337 = vmatpush2.msra.mxu0 0.0
    %338 = vmatprep.subr.mxu0 0.0
    %339 = vmatpush2.msra.mxu0 0.0
    %340 = vmatprep.subr.mxu0 0.0
    %341 = vmatpush2.msra.mxu0 0.0
    %342 = vmatprep.subr.mxu0 0.0
    %343 = vmatpush2.msra.mxu0 0.0
    %344 = vmatprep.subr.mxu0 0.0
    %345 = vmatpush2.msra.mxu0 0.0
    %346 = vmatprep.subr.mxu0 0.0
    %347 = vmatpush2.msra.mxu0 0.0
    %348 = vmatprep.subr.mxu0 0.0
    %349 = vmatpush2.msra.mxu0 0.0
    %350 = vmatprep.mubr.f32.mxu0 0.0
    %351 = vmatmul.mubr.f32.gmra.mxu0 %v262
    %v352 = vpop.f32.mrf.mxu0
    %v353 = vadd.f32 %v284, %v352
    %v354 = vpop.f32.mrf.mxu0
    %355 = vdwg.mxu0
    %356 = vst [vmem:[#allocation10] sm:$0x3] %v353
    // Predicated region
    $region46: #{tpu_custom_call.1} parent=1 // pred_check
      _
    $region47: #{tpu_custom_call.1} parent=1 // pred_check_branch
      %358 = sbr.rel (0) target = $region49
    $region48: #{tpu_custom_call.1} parent=1 // pred_region
      %s360 = ssub.s32 32, 32
      %361 = vsyncadd [#allocation4], %s360
      %s363 = sshll.u32 [#allocation10], 4
      %s364 = int_to_ptr.vmem [resolvable:$true] %s363
      %366 = dma.vmem_to_hbm [thread:$0]  %s364, 32, %s7, [#allocation4]
    $region49: #{tpu_custom_call.1} parent=1 // pred_fallthru
      _
    // Predicated region
    $region50: #{tpu_custom_call.1} parent=1 // pred_check
      _
    $region51: #{tpu_custom_call.1} parent=1 // pred_check_branch
      %368 = sbr.rel (0) target = $region53
    $region52: #{tpu_custom_call.1} parent=1 // pred_region
      %369 = dma.done [#allocation4], 32
    $region53: #{tpu_custom_call.1} parent=1 // pred_fallthru
      _
    %370 = vsyncpa [#allocation3], 1
    %371 = vsyncpa [#allocation6], 1
    %372 = vsyncpa [#allocation9], 1
    %373 = vsyncpa [#allocation4], 1

// kernel: tpu_custom_call.1
$region0: #{tpu_custom_call.1}
  #allocation0 [shape = 'u32[]', space=smem, size = 0x4, offset = 0x4, fixed_abs, tag = 'smem constant byte address 0x4 - core index']
  #allocation1 [shape = 'u32[144,128]{1,0:T(1,128)}', space=vmem, size = 0x12000, scoped, tag = 'internal scratch']
  %s0 = inlined_call_operand.hbm [shape: f32[2,16], index: 0, kind: input, shape index: {}]
  %s1 = inlined_call_operand.hbm [shape: f32[16,128], index: 1, kind: input, shape index: {}]
  %s2 = inlined_call_operand.vmem [shape: f32[1,128], index: 2, kind: input, shape index: {}]
  %s3 = inlined_call_operand.hbm [shape: f32[128,128], index: 3, kind: input, shape index: {}]
  %s4 = inlined_call_operand.vmem [shape: f32[1,128], index: 4, kind: input, shape index: {}]
  %s5 = inlined_call_operand.hbm [shape: f32[128,128], index: 5, kind: input, shape index: {}]
  %s6 = inlined_call_operand.vmem [shape: f32[1,128], index: 6, kind: input, shape index: {}]
  %s7 = inlined_call_operand.hbm [shape: f32[2,128], index: 7, kind: output, shape index: {}]
  %s8 = sld [smem:[#allocation0]]
  $region54: #{tpu_custom_call.1} parent=0
    _
  %s10 = ssub.s32 1, %s8
  %s11 = scalar_select 0, %s10, %s8
  $region1: #{tpu_custom_call.1} parent=0
    #allocation2 [shape = 'u8[1024]{0}', space=vmem, size = 0x400, scoped, tag = 'input window, operand 0, single buffered']
    #allocation3 [shape = 's32[1]{0}', space=sflag, size = 0x4, scoped, tag = 'scoped memory for tpu_custom_call.1']
    #allocation4 [shape = 's32[1]{0}', space=sflag, size = 0x4, scoped, tag = 'scoped memory for tpu_custom_call.1']
    #allocation5 [shape = 'u8[8192]{0}', space=vmem, size = 0x2000, scoped, tag = 'input window, operand 1, single buffered']
    #allocation6 [shape = 's32[1]{0}', space=sflag, size = 0x4, scoped, tag = 'scoped memory for tpu_custom_call.1']
    #allocation7 [shape = 'u8[65536]{0}', space=vmem, size = 0x10000, scoped, tag = 'input window, operand 3, single buffered']
    #allocation8 [shape = 'u8[65536]{0}', space=vmem, size = 0x10000, scoped, tag = 'input window, operand 5, single buffered']
    #allocation9 [shape = 's32[1]{0}', space=sflag, size = 0x4, scoped, tag = 'scoped memory for tpu_custom_call.1']
    #allocation10 [shape = 'u8[1024]{0}', space=vmem, size = 0x400, scoped, tag = 'output window, operand 0, single buffered']
    %12 = vsyncpa [#allocation3], 0
    %13 = vsyncpa [#allocation6], 0
    %14 = vsyncpa [#allocation9], 0
    %15 = vsyncpa [#allocation4], 0
    // Predicated region
    $region2: #{tpu_custom_call.1} parent=1 // pred_check
      _
    $region3: #{tpu_custom_call.1} parent=1 // pred_check_branch
      %17 = sbr.rel (0) target = $region5
    $region4: #{tpu_custom_call.1} parent=1 // pred_region
      %s19 = ssub.s32 32, 32
      %20 = vsyncadd [#allocation3], %s19
      %s22 = sshll.u32 [#allocation2], 4
      %s23 = int_to_ptr.vmem [resolvable:$true] %s22
      %25 = dma.hbm_to_vmem [thread:$0]  %s0, 32, %s23, [#allocation3]
    $region5: #{tpu_custom_call.1} parent=1 // pred_fallthru
      _
    // Predicated region
    $region6: #{tpu_custom_call.1} parent=1 // pred_check
      _
    $region7: #{tpu_custom_call.1} parent=1 // pred_check_branch
      %27 = sbr.rel (0) target = $region9
    $region8: #{tpu_custom_call.1} parent=1 // pred_region
      %s29 = ssub.s32 256, 256
      %30 = vsyncadd [#allocation6], %s29
      %s31 = sshll.u32 [#allocation5], 4
      %s32 = int_to_ptr.vmem [resolvable:$true] %s31
      %37 = dma.hbm_to_vmem [thread:$0]  %s1, 256, %s32, [#allocation6], 128, 128, 8
    $region9: #{tpu_custom_call.1} parent=1 // pred_fallthru
      _
    // Predicated region
    $region10: #{tpu_custom_call.1} parent=1 // pred_check
      _
    $region11: #{tpu_custom_call.1} parent=1 // pred_check_branch
      %39 = sbr.rel (0) target = $region13
    $region12: #{tpu_custom_call.1} parent=1 // pred_region
      _
    $region13: #{tpu_custom_call.1} parent=1 // pred_fallthru
      _
    // Predicated region
    $region14: #{tpu_custom_call.1} parent=1 // pred_check
      _
    $region15: #{tpu_custom_call.1} parent=1 // pred_check_branch
      %41 = sbr.rel (0) target = $region17
    $region16: #{tpu_custom_call.1} parent=1 // pred_region
      %s43 = ssub.s32 2048, 2048
      %44 = vsyncadd [#allocation6], %s43
      %s45 = sshll.u32 [#allocation7], 4
      %s46 = int_to_ptr.vmem [resolvable:$true] %s45
      %51 = dma.hbm_to_vmem [thread:$0]  %s3, 2048, %s46, [#allocation6], 128, 128, 8
    $region17: #{tpu_custom_call.1} parent=1 // pred_fallthru
      _
    // Predicated region
    $region18: #{tpu_custom_call.1} parent=1 // pred_check
      _
    $region19: #{tpu_custom_call.1} parent=1 // pred_check_branch
      %53 = sbr.rel (0) target = $region21
    $region20: #{tpu_custom_call.1} parent=1 // pred_region
      _
    $region21: #{tpu_custom_call.1} parent=1 // pred_fallthru
      _
    // Predicated region
    $region22: #{tpu_custom_call.1} parent=1 // pred_check
      _
    $region23: #{tpu_custom_call.1} parent=1 // pred_check_branch
      %55 = sbr.rel (0) target = $region25
    $region24: #{tpu_custom_call.1} parent=1 // pred_region
      %s57 = ssub.s32 2048, 2048
      %58 = vsyncadd [#allocation9], %s57
      %s59 = sshll.u32 [#allocation8], 4
      %s60 = int_to_ptr.vmem [resolvable:$true] %s59
      %65 = dma.hbm_to_vmem [thread:$0]  %s5, 2048, %s60, [#allocation9], 128, 128, 8
    $region25: #{tpu_custom_call.1} parent=1 // pred_fallthru
      _
    // Predicated region
    $region26: #{tpu_custom_call.1} parent=1 // pred_check
      _
    $region27: #{tpu_custom_call.1} parent=1 // pred_check_branch
      %67 = sbr.rel (0) target = $region29
    $region28: #{tpu_custom_call.1} parent=1 // pred_region
      _
    $region29: #{tpu_custom_call.1} parent=1 // pred_fallthru
      _
    // Predicated region
    $region30: #{tpu_custom_call.1} parent=1 // pred_check
      _
    $region31: #{tpu_custom_call.1} parent=1 // pred_check_branch
      %69 = sbr.rel (0) target = $region33
    $region32: #{tpu_custom_call.1} parent=1 // pred_region
      %70 = dma.done [#allocation3], 32
    $region33: #{tpu_custom_call.1} parent=1 // pred_fallthru
      _
    // Predicated region
    $region34: #{tpu_custom_call.1} parent=1 // pred_check
      _
    $region35: #{tpu_custom_call.1} parent=1 // pred_check_branch
      %72 = sbr.rel (0) target = $region37
    $region36: #{tpu_custom_call.1} parent=1 // pred_region
      %73 = dma.done [#allocation6], 256
    $region37: #{tpu_custom_call.1} parent=1 // pred_fallthru
      _
    // Predicated region
    $region38: #{tpu_custom_call.1} parent=1 // pred_check
      _
    $region39: #{tpu_custom_call.1} parent=1 // pred_check_branch
      %75 = sbr.rel (0) target = $region41
    $region40: #{tpu_custom_call.1} parent=1 // pred_region
      %76 = dma.done [#allocation6], 2048
    $region41: #{tpu_custom_call.1} parent=1 // pred_fallthru
      _
    // Predicated region
    $region42: #{tpu_custom_call.1} parent=1 // pred_check
      _
    $region43: #{tpu_custom_call.1} parent=1 // pred_check_branch
      %78 = sbr.rel (0) target = $region45
    $region44: #{tpu_custom_call.1} parent=1 // pred_region
      %79 = dma.done [#allocation9], 2048
    $region45: #{tpu_custom_call.1} parent=1 // pred_fallthru
      _
    %v80 = vld [vmem:[#allocation2] sm:$0x3]
    %v81 = vld [vmem:[#allocation5] sm:$0xff]
    %v82 = vld [vmem:[#allocation5 + $0x8] sm:$0xff]
    %v83 = vld [vmem:[%s2] sm:$0x1]
    %v85 = vlaneseq
    %v86 = vshrl.u32 %v85, 7
    %v87 = vsub.s32 0, %v86
    %v88 = vrot.slane %v83, %v87
    %vm90 = vcmask 130048
    %v92 = vsel %vm90, %v80, 0
    %94 = vmatprep.subr.mxu0 0.0
    %95 = vmatpush1.msra.mxu0 0.0
    %96 = vmatprep.subr.mxu0 0.0
    %97 = vmatpush1.msra.mxu0 0.0
    %98 = vmatprep.subr.mxu0 0.0
    %99 = vmatpush1.msra.mxu0 0.0
    %100 = vmatprep.subr.mxu0 0.0
    %101 = vmatpush1.msra.mxu0 0.0
    %102 = vmatprep.subr.mxu0 0.0
    %103 = vmatpush1.msra.mxu0 0.0
    %104 = vmatprep.subr.mxu0 0.0
    %105 = vmatpush1.msra.mxu0 0.0
    %106 = vmatprep.subr.mxu0 0.0
    %107 = vmatpush1.msra.mxu0 0.0
    %108 = vmatprep.subr.mxu0 0.0
    %109 = vmatpush1.msra.mxu0 0.0
    %110 = vmatprep.subr.mxu0 0.0
    %111 = vmatpush1.msra.mxu0 0.0
    %112 = vmatprep.subr.mxu0 0.0
    %113 = vmatpush1.msra.mxu0 0.0
    %114 = vmatprep.subr.mxu0 0.0
    %115 = vmatpush1.msra.mxu0 0.0
    %116 = vmatprep.subr.mxu0 0.0
    %117 = vmatpush1.msra.mxu0 0.0
    %118 = vmatprep.subr.mxu0 0.0
    %119 = vmatpush1.msra.mxu0 0.0
    %120 = vmatprep.subr.mxu0 0.0
    %121 = vmatpush1.msra.mxu0 0.0
    %122 = vmatprep.subr.mxu0 0.0
    %123 = vmatpush1.msra.mxu0 %v82
    %124 = vmatprep.subr.mxu0 0.0
    %125 = vmatpush1.msra.mxu0 %v81
    %126 = vmatprep.subr.mxu0 0.0
    %127 = vmatpush2.msra.mxu0 0.0
    %128 = vmatprep.subr.mxu0 0.0
    %129 = vmatpush2.msra.mxu0 0.0
    %130 = vmatprep.subr.mxu0 0.0
    %131 = vmatpush2.msra.mxu0 0.0
    %132 = vmatprep.subr.mxu0 0.0
    %133 = vmatpush2.msra.mxu0 0.0
    %134 = vmatprep.subr.mxu0 0.0
    %135 = vmatpush2.msra.mxu0 0.0
    %136 = vmatprep.subr.mxu0 0.0
    %137 = vmatpush2.msra.mxu0 0.0
    %138 = vmatprep.subr.mxu0 0.0
    %139 = vmatpush2.msra.mxu0 0.0
    %140 = vmatprep.subr.mxu0 0.0
    %141 = vmatpush2.msra.mxu0 0.0
    %142 = vmatprep.subr.mxu0 0.0
    %143 = vmatpush2.msra.mxu0 0.0
    %144 = vmatprep.subr.mxu0 0.0
    %145 = vmatpush2.msra.mxu0 0.0
    %146 = vmatprep.subr.mxu0 0.0
    %147 = vmatpush2.msra.mxu0 0.0
    %148 = vmatprep.subr.mxu0 0.0
    %149 = vmatpush2.msra.mxu0 0.0
    %150 = vmatprep.subr.mxu0 0.0
    %151 = vmatpush2.msra.mxu0 0.0
    %152 = vmatprep.subr.mxu0 0.0
    %153 = vmatpush2.msra.mxu0 0.0
    %154 = vmatprep.subr.mxu0 0.0
    %155 = vmatpush2.msra.mxu0 0.0
    %156 = vmatprep.subr.mxu0 0.0
    %157 = vmatpush2.msra.mxu0 0.0
    %158 = vmatprep.mubr.f32.mxu0 0.0
    %159 = vmatmul.mubr.f32.gmra.mxu0 %v92
    %v160 = vpop.f32.mrf.mxu0
    %v161 = vadd.f32 %v88, %v160
    %v162 = vpop.f32.mrf.mxu0
    %163 = vdwg.mxu0
    %vm164 = vcmp.gt.f32.partialorder %v161, 0.0
    %v165 = vmul.f32 %v161, 0.01
    %v166 = vsel %vm164, %v161, %v165
    %v167 = vld [vmem:[#allocation7] sm:$0xff]
    %v168 = vld [vmem:[#allocation7 + $0x8] sm:$0xff]
    %v169 = vld [vmem:[#allocation7 + $0x10] sm:$0xff]
    %v170 = vld [vmem:[#allocation7 + $0x18] sm:$0xff]
    %v171 = vld [vmem:[#allocation7 + $0x20] sm:$0xff]
    %v172 = vld [vmem:[#allocation7 + $0x28] sm:$0xff]
    %v173 = vld [vmem:[#allocation7 + $0x30] sm:$0xff]
    %v174 = vld [vmem:[#allocation7 + $0x38] sm:$0xff]
    %v175 = vld [vmem:[#allocation7 + $0x40] sm:$0xff]
    %v176 = vld [vmem:[#allocation7 + $0x48] sm:$0xff]
    %v177 = vld [vmem:[#allocation7 + $0x50] sm:$0xff]
    %v178 = vld [vmem:[#allocation7 + $0x58] sm:$0xff]
    %v179 = vld [vmem:[#allocation7 + $0x60] sm:$0xff]
    %v180 = vld [vmem:[#allocation7 + $0x68] sm:$0xff]
    %v181 = vld [vmem:[#allocation7 + $0x70] sm:$0xff]
    %v182 = vld [vmem:[#allocation7 + $0x78] sm:$0xff]
    %v183 = vld [vmem:[%s4] sm:$0x1]
    %v185 = vlaneseq
    %v186 = vshrl.u32 %v185, 7
    %v187 = vsub.s32 0, %v186
    %v188 = vrot.slane %v183, %v187
    %190 = vmatprep.subr.mxu0 0.0
    %191 = vmatpush1.msra.mxu0 %v182
    %192 = vmatprep.subr.mxu0 0.0
    %193 = vmatpush1.msra.mxu0 %v181
    %194 = vmatprep.subr.mxu0 0.0
    %195 = vmatpush1.msra.mxu0 %v180
    %196 = vmatprep.subr.mxu0 0.0
    %197 = vmatpush1.msra.mxu0 %v179
    %198 = vmatprep.subr.mxu0 0.0
    %199 = vmatpush1.msra.mxu0 %v178
    %200 = vmatprep.subr.mxu0 0.0
    %201 = vmatpush1.msra.mxu0 %v177
    %202 = vmatprep.subr.mxu0 0.0
    %203 = vmatpush1.msra.mxu0 %v176
    %204 = vmatprep.subr.mxu0 0.0
    %205 = vmatpush1.msra.mxu0 %v175
    %206 = vmatprep.subr.mxu0 0.0
    %207 = vmatpush1.msra.mxu0 %v174
    %208 = vmatprep.subr.mxu0 0.0
    %209 = vmatpush1.msra.mxu0 %v173
    %210 = vmatprep.subr.mxu0 0.0
    %211 = vmatpush1.msra.mxu0 %v172
    %212 = vmatprep.subr.mxu0 0.0
    %213 = vmatpush1.msra.mxu0 %v171
    %214 = vmatprep.subr.mxu0 0.0
    %215 = vmatpush1.msra.mxu0 %v170
    %216 = vmatprep.subr.mxu0 0.0
    %217 = vmatpush1.msra.mxu0 %v169
    %218 = vmatprep.subr.mxu0 0.0
    %219 = vmatpush1.msra.mxu0 %v168
    %220 = vmatprep.subr.mxu0 0.0
    %221 = vmatpush1.msra.mxu0 %v167
    %222 = vmatprep.subr.mxu0 0.0
    %223 = vmatpush2.msra.mxu0 0.0
    %224 = vmatprep.subr.mxu0 0.0
    %225 = vmatpush2.msra.mxu0 0.0
    %226 = vmatprep.subr.mxu0 0.0
    %227 = vmatpush2.msra.mxu0 0.0
    %228 = vmatprep.subr.mxu0 0.0
    %229 = vmatpush2.msra.mxu0 0.0
    %230 = vmatprep.subr.mxu0 0.0
    %231 = vmatpush2.msra.mxu0 0.0
    %232 = vmatprep.subr.mxu0 0.0
    %233 = vmatpush2.msra.mxu0 0.0
    %234 = vmatprep.subr.mxu0 0.0
    %235 = vmatpush2.msra.mxu0 0.0
    %236 = vmatprep.subr.mxu0 0.0
    %237 = vmatpush2.msra.mxu0 0.0
    %238 = vmatprep.subr.mxu0 0.0
    %239 = vmatpush2.msra.mxu0 0.0
    %240 = vmatprep.subr.mxu0 0.0
    %241 = vmatpush2.msra.mxu0 0.0
    %242 = vmatprep.subr.mxu0 0.0
    %243 = vmatpush2.msra.mxu0 0.0
    %244 = vmatprep.subr.mxu0 0.0
    %245 = vmatpush2.msra.mxu0 0.0
    %246 = vmatprep.subr.mxu0 0.0
    %247 = vmatpush2.msra.mxu0 0.0
    %248 = vmatprep.subr.mxu0 0.0
    %249 = vmatpush2.msra.mxu0 0.0
    %250 = vmatprep.subr.mxu0 0.0
    %251 = vmatpush2.msra.mxu0 0.0
    %252 = vmatprep.subr.mxu0 0.0
    %253 = vmatpush2.msra.mxu0 0.0
    %254 = vmatprep.mubr.f32.mxu0 0.0
    %255 = vmatmul.mubr.f32.gmra.mxu0 %v166
    %v256 = vpop.f32.mrf.mxu0
    %v257 = vadd.f32 %v188, %v256
    %v258 = vpop.f32.mrf.mxu0
    %259 = vdwg.mxu0
    %vm260 = vcmp.gt.f32.partialorder %v257, 0.0
    %v261 = vmul.f32 %v257, 0.01
    %v262 = vsel %vm260, %v257, %v261
    %v263 = vld [vmem:[#allocation8] sm:$0xff]
    %v264 = vld [vmem:[#allocation8 + $0x8] sm:$0xff]
    %v265 = vld [vmem:[#allocation8 + $0x10] sm:$0xff]
    %v266 = vld [vmem:[#allocation8 + $0x18] sm:$0xff]
    %v267 = vld [vmem:[#allocation8 + $0x20] sm:$0xff]
    %v268 = vld [vmem:[#allocation8 + $0x28] sm:$0xff]
    %v269 = vld [vmem:[#allocation8 + $0x30] sm:$0xff]
    %v270 = vld [vmem:[#allocation8 + $0x38] sm:$0xff]
    %v271 = vld [vmem:[#allocation8 + $0x40] sm:$0xff]
    %v272 = vld [vmem:[#allocation8 + $0x48] sm:$0xff]
    %v273 = vld [vmem:[#allocation8 + $0x50] sm:$0xff]
    %v274 = vld [vmem:[#allocation8 + $0x58] sm:$0xff]
    %v275 = vld [vmem:[#allocation8 + $0x60] sm:$0xff]
    %v276 = vld [vmem:[#allocation8 + $0x68] sm:$0xff]
    %v277 = vld [vmem:[#allocation8 + $0x70] sm:$0xff]
    %v278 = vld [vmem:[#allocation8 + $0x78] sm:$0xff]
    %v279 = vld [vmem:[%s6] sm:$0x1]
    %v281 = vlaneseq
    %v282 = vshrl.u32 %v281, 7
    %v283 = vsub.s32 0, %v282
    %v284 = vrot.slane %v279, %v283
    %286 = vmatprep.subr.mxu0 0.0
    %287 = vmatpush1.msra.mxu0 %v278
    %288 = vmatprep.subr.mxu0 0.0
    %289 = vmatpush1.msra.mxu0 %v277
    %290 = vmatprep.subr.mxu0 0.0
    %291 = vmatpush1.msra.mxu0 %v276
    %292 = vmatprep.subr.mxu0 0.0
    %293 = vmatpush1.msra.mxu0 %v275
    %294 = vmatprep.subr.mxu0 0.0
    %295 = vmatpush1.msra.mxu0 %v274
    %296 = vmatprep.subr.mxu0 0.0
    %297 = vmatpush1.msra.mxu0 %v273
    %298 = vmatprep.subr.mxu0 0.0
    %299 = vmatpush1.msra.mxu0 %v272
    %300 = vmatprep.subr.mxu0 0.0
    %301 = vmatpush1.msra.mxu0 %v271
    %302 = vmatprep.subr.mxu0 0.0
    %303 = vmatpush1.msra.mxu0 %v270
    %304 = vmatprep.subr.mxu0 0.0
    %305 = vmatpush1.msra.mxu0 %v269
    %306 = vmatprep.subr.mxu0 0.0
    %307 = vmatpush1.msra.mxu0 %v268
    %308 = vmatprep.subr.mxu0 0.0
    %309 = vmatpush1.msra.mxu0 %v267
    %310 = vmatprep.subr.mxu0 0.0
    %311 = vmatpush1.msra.mxu0 %v266
    %312 = vmatprep.subr.mxu0 0.0
    %313 = vmatpush1.msra.mxu0 %v265
    %314 = vmatprep.subr.mxu0 0.0
    %315 = vmatpush1.msra.mxu0 %v264
    %316 = vmatprep.subr.mxu0 0.0
    %317 = vmatpush1.msra.mxu0 %v263
    %318 = vmatprep.subr.mxu0 0.0
    %319 = vmatpush2.msra.mxu0 0.0
    %320 = vmatprep.subr.mxu0 0.0
    %321 = vmatpush2.msra.mxu0 0.0
    %322 = vmatprep.subr.mxu0 0.0
    %323 = vmatpush2.msra.mxu0 0.0
    %324 = vmatprep.subr.mxu0 0.0
    %325 = vmatpush2.msra.mxu0 0.0
    %326 = vmatprep.subr.mxu0 0.0
    %327 = vmatpush2.msra.mxu0 0.0
    %328 = vmatprep.subr.mxu0 0.0
    %329 = vmatpush2.msra.mxu0 0.0
    %330 = vmatprep.subr.mxu0 0.0
    %331 = vmatpush2.msra.mxu0 0.0
    %332 = vmatprep.subr.mxu0 0.0
    %333 = vmatpush2.msra.mxu0 0.0
    %334 = vmatprep.subr.mxu0 0.0
    %335 = vmatpush2.msra.mxu0 0.0
    %336 = vmatprep.subr.mxu0 0.0
    %337 = vmatpush2.msra.mxu0 0.0
    %338 = vmatprep.subr.mxu0 0.0
    %339 = vmatpush2.msra.mxu0 0.0
    %340 = vmatprep.subr.mxu0 0.0
    %341 = vmatpush2.msra.mxu0 0.0
    %342 = vmatprep.subr.mxu0 0.0
    %343 = vmatpush2.msra.mxu0 0.0
    %344 = vmatprep.subr.mxu0 0.0
    %345 = vmatpush2.msra.mxu0 0.0
    %346 = vmatprep.subr.mxu0 0.0
    %347 = vmatpush2.msra.mxu0 0.0
    %348 = vmatprep.subr.mxu0 0.0
    %349 = vmatpush2.msra.mxu0 0.0
    %350 = vmatprep.mubr.f32.mxu0 0.0
    %351 = vmatmul.mubr.f32.gmra.mxu0 %v262
    %v352 = vpop.f32.mrf.mxu0
    %v353 = vadd.f32 %v284, %v352
    %v354 = vpop.f32.mrf.mxu0
    %355 = vdwg.mxu0
    %356 = vst [vmem:[#allocation10] sm:$0x3] %v353
    // Predicated region
    $region46: #{tpu_custom_call.1} parent=1 // pred_check
      _
    $region47: #{tpu_custom_call.1} parent=1 // pred_check_branch
      %358 = sbr.rel (0) target = $region49
    $region48: #{tpu_custom_call.1} parent=1 // pred_region
      %s360 = ssub.s32 32, 32
      %361 = vsyncadd [#allocation4], %s360
      %s363 = sshll.u32 [#allocation10], 4
      %s364 = int_to_ptr.vmem [resolvable:$true] %s363
      %366 = dma.vmem_to_hbm [thread:$0]  %s364, 32, %s7, [#allocation4]
    $region49: #{tpu_custom_call.1} parent=1 // pred_fallthru
      _
    // Predicated region
    $region50: #{tpu_custom_call.1} parent=1 // pred_check
      _
    $region51: #{tpu_custom_call.1} parent=1 // pred_check_branch
      %368 = sbr.rel (0) target = $region53
    $region52: #{tpu_custom_call.1} parent=1 // pred_region
      %369 = dma.done [#allocation4], 32
    $region53: #{tpu_custom_call.1} parent=1 // pred_fallthru
      _
    %370 = vsyncpa [#allocation3], 1
    %371 = vsyncpa [#allocation6], 1
    %372 = vsyncpa [#allocation9], 1
    %373 = vsyncpa [#allocation4], 1

</llo_original>
